<compile_context>
chip_gen: v6e
topology: v6e:2x2x1
jax: 0.10.0
libtpu: 0.0.40
codegen_flags: <defaults>
</compile_context>

<pallas_src>
import jax
import jax.numpy as jnp
from jax import lax
from jax.experimental import pallas as pl
from jax.experimental.pallas import tpu as pltpu


def _round_up(x, m):
    return -(-x // m) * m


def _centroids_kernel(codes_ref, table_ref, out_ref):
    """One grid step: gather `bm * pack` embedding rows via a one-hot matmul.

    codes_ref : VMEM (bm, pack) int32   -- codes[r, p] = id[r*pack + p]*pack + p
    table_ref : VMEM (kdim, out_w)      -- block-diagonal packed table (kdim = n_classes*pack)
    out_ref   : VMEM (bm, out_w)        -- lane-dense output tile (out_w = pack*n_dim)
    """
    codes = codes_ref[...]
    bm, pack = codes.shape
    kdim = table_ref.shape[0]
    table = table_ref[...]                      # stays in its own dtype (no per-step cast)

    # one-hot[r, k] = any_p(codes[r, p] == k); codes are distinct per row, so the
    # OR of the pack boolean masks is exactly the one-hot of the packed gather.
    k_iota = lax.broadcasted_iota(jnp.int32, (bm, kdim), 1)
    hit = k_iota == codes[:, 0:1]
    for p in range(1, pack):                    # pack is small & static -> unrolled VPU compares
        hit = hit | (k_iota == codes[:, p:p + 1])
    onehot = hit.astype(table.dtype)            # 0/1 exact in bf16/f32 -> exact lookup

    out_ref[...] = jnp.dot(
        onehot, table, preferred_element_type=jnp.float32
    ).astype(out_ref.dtype)


def pack_centroid_table(table):
    """Build the block-diagonal packed table.  Call ONCE per weight and cache it.

    Row c*pack+p carries table[c] at columns [p*n_dim, (p+1)*n_dim); a one-hot
    matmul against it yields `pack` gathered rows packed into one 128-lane row.
    """
    n_classes, n_dim = table.shape
    if n_dim < 128 and 128 % n_dim == 0 and n_dim >= 8:
        pack = 128 // n_dim
    else:
        # TODO(synk): n_dim < 8 or non-divisor dims fall back to pack=1 and
        # lane-sparse (masked) stores -- correct, just slower.
        pack = 1
    if pack == 1:
        return table, pack
    eye = jnp.eye(pack, dtype=table.dtype)
    packed = (table[:, None, None, :] * eye[None, :, :, None]).reshape(
        n_classes * pack, pack * n_dim)
    return packed, pack


_MIN_SPLIT_ROWS = 256   # only split a single block in two if each half gets >= this many rows


def centroids_lookup(indices, table_packed, n_classes, n_dim, pack, *, block_rows=2048):
    """Equivalent of Centroids.forward(indices) == self.embeddings(indices)."""
    kdim, out_w = table_packed.shape
    assert kdim == n_classes * pack and out_w == pack * n_dim

    # Clamp out-of-range ids (PyTorch nn.Embedding would raise; we avoid garbage reads).
    flat = jnp.clip(indices.reshape(-1).astype(jnp.int32), 0, n_classes - 1)
    n = flat.shape[0]

    rows = -(-n // pack)                        # packed output rows needed
    rows_aligned = _round_up(max(rows, 1), 8)   # sublane-aligned
    bm_max = max(8, (block_rows // 8) * 8)

    if rows_aligned <= bm_max:
        # Everything fits in one block.  When there is enough work, split it in
        # two so the "parallel" grid axis can shard across v7x's two TensorCores.
        if rows_aligned >= 2 * _MIN_SPLIT_ROWS:
            bm = _round_up(-(-rows_aligned // 2), 8)
        else:
            bm = rows_aligned
    else:
        bm = bm_max

    rows_padded = _round_up(rows, bm)
    n_padded = rows_padded * pack
    grid = (rows_padded // bm,)

    # Precompute packed-row codes once in the wrapper (codes[r, p] = id*pack + p).
    # Padding uses class 0 (a valid id); padded rows are sliced off below.
    flat_p = jnp.pad(flat, (0, n_padded - n))
    codes = (flat_p.reshape(rows_padded, pack) * pack
             + jnp.arange(pack, dtype=jnp.int32)[None, :])

    itemsize = jnp.dtype(table_packed.dtype).itemsize
    # VMEM budget: 2x out tile + 2x codes tile (pack < 128 lanes pads to 128!)
    # + 1x resident table + one-hot intermediate.  Cap below v7x's 64 MiB physical.
    vmem_need = (2 * bm * out_w * itemsize
                 + 2 * bm * 128 * 4
                 + kdim * max(out_w, 128) * itemsize
                 + bm * kdim * 4)
    vmem_limit = int(min(48 * 1024 * 1024, max(2 * vmem_need, 32 * 1024 * 1024)))

    cost = pl.CostEstimate(
        flops=int(2 * rows_padded * kdim * out_w),
        transcendentals=0,
        bytes_accessed=int(itemsize * (rows_padded * out_w + kdim * out_w)
                           + 4 * rows_padded * pack),
    )

    def build(table_pipeline_mode):
        table_kwargs = {}
        if table_pipeline_mode is not None:
            table_kwargs["pipeline_mode"] = table_pipeline_mode
        return pl.pallas_call(
            _centroids_kernel,
            out_shape=jax.ShapeDtypeStruct((rows_padded, out_w), table_packed.dtype),
            grid=grid,
            in_specs=[
                pl.BlockSpec((bm, pack), lambda i: (i, 0)),            # codes (double-buffered)
                pl.BlockSpec((kdim, out_w), lambda i: (0, 0), **table_kwargs),
            ],
            out_specs=pl.BlockSpec((bm, out_w), lambda i: (i, 0)),
            compiler_params=pltpu.CompilerParams(
                dimension_semantics=("parallel",),                     # disjoint output blocks
                vmem_limit_bytes=vmem_limit,
            ),
            cost_estimate=cost,
        )

    try:
        # Constant index_map -> table fetched once; single-buffer it to halve its VMEM.
        out = build(pl.Buffered(1))(codes, table_packed)
    except Exception:  # pragma: no cover - Pallas builds without per-spec pipeline_mode
        out = build(None)(codes, table_packed)

    out_flat = out.reshape(n_padded, n_dim)[:n]
    return out_flat.reshape(indices.shape + (n_dim,))


class Centroids:
    """Pallas-TPU port of pyannote's Centroids module (an nn.Embedding lookup).

    The block-diagonal packed table is built once here and reused every call.
    """

    def __init__(self, n_dimensions, n_classes, *, key, dtype=jnp.float32):
        self.n_dimensions = n_dimensions
        self.n_classes = n_classes
        # nn.Embedding default init: weight ~ N(0, 1)
        self.weight = jax.random.normal(key, (n_classes, n_dimensions), dtype=dtype)
        self.table_packed, self.pack = pack_centroid_table(self.weight)

    def __call__(self, indices, *, block_rows=2048):
        return centroids_lookup(indices, self.table_packed, self.n_classes,
                                self.n_dimensions, self.pack, block_rows=block_rows)


if __name__ == "__main__":
    n_classes = 16
    n_dimensions = 32

    key = jax.random.PRNGKey(0)
    k_table, k_idx = jax.random.split(key)

    module = Centroids(n_dimensions, n_classes, key=k_table)

    # indices: batch of class ids, shape (2, 8)
    indices = jax.random.randint(k_idx, (2, 8), 0, n_classes, dtype=jnp.int32)

    out = module(indices)
    out = jax.block_until_ready(out)

    # reference: plain gather
    ref = jnp.take(module.weight, indices, axis=0)
    assert out.shape == (2, 8, n_dimensions)
    assert jnp.allclose(out, ref), "mismatch vs. reference embedding lookup"

    print("KERNEL_OK")
</pallas_src>

<mosaic_0001>
module attributes {stable_mosaic.version = 11 : i64} {
  func.func @_centroids_kernel(%arg0: i32, %arg1: memref<8x4xi32, #tpu.memory_space<vmem>>, %arg2: memref<64x128xf32, #tpu.memory_space<vmem>>, %arg3: memref<8x128xf32, #tpu.memory_space<vmem>>) attributes {dimension_semantics = [#tpu.dimension_semantics<parallel>], iteration_bounds = array<i64: 1>, scalar_prefetch = 0 : i64, scratch_operands = 0 : i64, tpu.core_type = #tpu.core_type<tc>, window_params = [{transform_indices = @transform_0, window_bounds = array<i64: 8, 4>}, {pipeline_mode = #tpu.pipeline_mode<synchronous>, transform_indices = @transform_1, window_bounds = array<i64: 64, 128>}, {transform_indices = @transform_2, window_bounds = array<i64: 8, 128>}]} {
    %c0 = arith.constant 0 : index
    %c0_0 = arith.constant 0 : index
    %0 = vector.load %arg1[%c0, %c0_0] : memref<8x4xi32, #tpu.memory_space<vmem>>, vector<8x4xi32>
    %c0_1 = arith.constant 0 : index
    %c0_2 = arith.constant 0 : index
    %1 = vector.load %arg2[%c0_1, %c0_2] : memref<64x128xf32, #tpu.memory_space<vmem>>, vector<64x128xf32>
    %2 = tpu.iota {dimensions = array<i32: 1>} : vector<8x64xi32>
    %3 = vector.extract_strided_slice %0 {offsets = [0, 0], sizes = [8, 1], strides = [1, 1]} : vector<8x4xi32> to vector<8x1xi32>
    %4 = vector.broadcast %3 : vector<8x1xi32> to vector<8x64xi32>
    %5 = arith.cmpi eq, %2, %4 : vector<8x64xi32>
    %6 = vector.extract_strided_slice %0 {offsets = [0, 1], sizes = [8, 1], strides = [1, 1]} : vector<8x4xi32> to vector<8x1xi32>
    %7 = vector.broadcast %6 : vector<8x1xi32> to vector<8x64xi32>
    %8 = arith.cmpi eq, %2, %7 : vector<8x64xi32>
    %9 = arith.ori %5, %8 : vector<8x64xi1>
    %10 = vector.extract_strided_slice %0 {offsets = [0, 2], sizes = [8, 1], strides = [1, 1]} : vector<8x4xi32> to vector<8x1xi32>
    %11 = vector.broadcast %10 : vector<8x1xi32> to vector<8x64xi32>
    %12 = arith.cmpi eq, %2, %11 : vector<8x64xi32>
    %13 = arith.ori %9, %12 : vector<8x64xi1>
    %14 = vector.extract_strided_slice %0 {offsets = [0, 3], sizes = [8, 1], strides = [1, 1]} : vector<8x4xi32> to vector<8x1xi32>
    %15 = vector.broadcast %14 : vector<8x1xi32> to vector<8x64xi32>
    %16 = arith.cmpi eq, %2, %15 : vector<8x64xi32>
    %17 = arith.ori %13, %16 : vector<8x64xi1>
    %18 = arith.extui %17 : vector<8x64xi1> to vector<8x64xi32>
    %19 = arith.sitofp %18 : vector<8x64xi32> to vector<8x64xf32>
    %cst = arith.constant dense<0.000000e+00> : vector<8x128xf32>
    %20 = tpu.matmul %19, %1, %cst {dimension_numbers = #tpu.dot_dimension_numbers<[1], [0], [0], [1], [0, 0, 1, 1], [], []>} : vector<8x64xf32>, vector<64x128xf32>, vector<8x128xf32> -> vector<8x128xf32>
    %c0_3 = arith.constant 0 : index
    %c0_4 = arith.constant 0 : index
    %21 = vector.load %arg3[%c0_3, %c0_4] : memref<8x128xf32, #tpu.memory_space<vmem>>, vector<8x128xf32>
    tpu.vector_store %arg3[%c0_3, %c0_4], %20 {strides = array<i32>} : memref<8x128xf32, #tpu.memory_space<vmem>>, vector<8x128xf32>,
    return
  }
  func.func @transform_0(%arg0: i32) -> (i32, i32) {
    %c0_i32 = arith.constant 0 : i32
    %c0_i32_0 = arith.constant 0 : i32
    return %arg0, %c0_i32 : i32, i32
  }
  func.func @transform_1(%arg0: i32) -> (i32, i32) {
    %c0_i32 = arith.constant 0 : i32
    %c0_i32_0 = arith.constant 0 : i32
    %c0_i32_1 = arith.constant 0 : i32
    return %c0_i32, %c0_i32_0 : i32, i32
  }
  func.func @transform_2(%arg0: i32) -> (i32, i32) {
    %c0_i32 = arith.constant 0 : i32
    %c0_i32_0 = arith.constant 0 : i32
    return %arg0, %c0_i32 : i32, i32
  }
}

module attributes {stable_mosaic.version = 11 : i64} {
  func.func @_centroids_kernel(%arg0: i32, %arg1: memref<8x4xi32, #tpu.memory_space<vmem>>, %arg2: memref<64x128xf32, #tpu.memory_space<vmem>>, %arg3: memref<8x128xf32, #tpu.memory_space<vmem>>) attributes {dimension_semantics = [#tpu.dimension_semantics<parallel>], iteration_bounds = array<i64: 1>, scalar_prefetch = 0 : i64, scratch_operands = 0 : i64, tpu.core_type = #tpu.core_type<tc>, window_params = [{transform_indices = @transform_0, window_bounds = array<i64: 8, 4>}, {pipeline_mode = #tpu.pipeline_mode<synchronous>, transform_indices = @transform_1, window_bounds = array<i64: 64, 128>}, {transform_indices = @transform_2, window_bounds = array<i64: 8, 128>}]} {
    %c0 = arith.constant 0 : index
    %c0_0 = arith.constant 0 : index
    %0 = vector.load %arg1[%c0, %c0_0] : memref<8x4xi32, #tpu.memory_space<vmem>>, vector<8x4xi32>
    %c0_1 = arith.constant 0 : index
    %c0_2 = arith.constant 0 : index
    %1 = vector.load %arg2[%c0_1, %c0_2] : memref<64x128xf32, #tpu.memory_space<vmem>>, vector<64x128xf32>
    %2 = tpu.iota {dimensions = array<i32: 1>} : vector<8x64xi32>
    %3 = vector.extract_strided_slice %0 {offsets = [0, 0], sizes = [8, 1], strides = [1, 1]} : vector<8x4xi32> to vector<8x1xi32>
    %4 = vector.broadcast %3 : vector<8x1xi32> to vector<8x64xi32>
    %5 = arith.cmpi eq, %2, %4 : vector<8x64xi32>
    %6 = vector.extract_strided_slice %0 {offsets = [0, 1], sizes = [8, 1], strides = [1, 1]} : vector<8x4xi32> to vector<8x1xi32>
    %7 = vector.broadcast %6 : vector<8x1xi32> to vector<8x64xi32>
    %8 = arith.cmpi eq, %2, %7 : vector<8x64xi32>
    %9 = arith.ori %5, %8 : vector<8x64xi1>
    %10 = vector.extract_strided_slice %0 {offsets = [0, 2], sizes = [8, 1], strides = [1, 1]} : vector<8x4xi32> to vector<8x1xi32>
    %11 = vector.broadcast %10 : vector<8x1xi32> to vector<8x64xi32>
    %12 = arith.cmpi eq, %2, %11 : vector<8x64xi32>
    %13 = arith.ori %9, %12 : vector<8x64xi1>
    %14 = vector.extract_strided_slice %0 {offsets = [0, 3], sizes = [8, 1], strides = [1, 1]} : vector<8x4xi32> to vector<8x1xi32>
    %15 = vector.broadcast %14 : vector<8x1xi32> to vector<8x64xi32>
    %16 = arith.cmpi eq, %2, %15 : vector<8x64xi32>
    %17 = arith.ori %13, %16 : vector<8x64xi1>
    %18 = arith.extui %17 : vector<8x64xi1> to vector<8x64xi32>
    %19 = arith.sitofp %18 : vector<8x64xi32> to vector<8x64xf32>
    %cst = arith.constant dense<0.000000e+00> : vector<8x128xf32>
    %20 = tpu.matmul %19, %1, %cst {dimension_numbers = #tpu.dot_dimension_numbers<[1], [0], [0], [1], [0, 0, 1, 1], [], []>} : vector<8x64xf32>, vector<64x128xf32>, vector<8x128xf32> -> vector<8x128xf32>
    %c0_3 = arith.constant 0 : index
    %c0_4 = arith.constant 0 : index
    %21 = vector.load %arg3[%c0_3, %c0_4] : memref<8x128xf32, #tpu.memory_space<vmem>>, vector<8x128xf32>
    tpu.vector_store %arg3[%c0_3, %c0_4], %20 {strides = array<i32>} : memref<8x128xf32, #tpu.memory_space<vmem>>, vector<8x128xf32>,
    return
  }
  func.func @transform_0(%arg0: i32) -> (i32, i32) {
    %c0_i32 = arith.constant 0 : i32
    %c0_i32_0 = arith.constant 0 : i32
    return %arg0, %c0_i32 : i32, i32
  }
  func.func @transform_1(%arg0: i32) -> (i32, i32) {
    %c0_i32 = arith.constant 0 : i32
    %c0_i32_0 = arith.constant 0 : i32
    %c0_i32_1 = arith.constant 0 : i32
    return %c0_i32, %c0_i32_0 : i32, i32
  }
  func.func @transform_2(%arg0: i32) -> (i32, i32) {
    %c0_i32 = arith.constant 0 : i32
    %c0_i32_0 = arith.constant 0 : i32
    return %arg0, %c0_i32 : i32, i32
  }
}

</mosaic_0001>

<llo_original>
// kernel: tpu_custom_call.1
$region0: #{tpu_custom_call.1}
  #allocation0 [shape = 'u32[]', space=smem, size = 0x4, offset = 0x4, fixed_abs, tag = 'smem constant byte address 0x4 - core index']
  #allocation1 [shape = 'u32[144,128]{1,0:T(1,128)}', space=vmem, size = 0x12000, scoped, tag = 'internal scratch']
  %s0 = inlined_call_operand.vmem [shape: s32[8,4], index: 0, kind: input, shape index: {}]
  %s1 = inlined_call_operand.hbm [shape: f32[64,128], index: 1, kind: input, shape index: {}]
  %s2 = inlined_call_operand.hbm [shape: f32[8,128], index: 2, kind: output, shape index: {}]
  %s3 = sld [smem:[#allocation0]]
  $region22: #{tpu_custom_call.1} parent=0
    _
  %s5 = ssub.s32 1, %s3
  %s6 = scalar_select 0, %s5, %s3
  $region1: #{tpu_custom_call.1} parent=0
    #allocation2 [shape = 'u8[32768]{0}', space=vmem, size = 0x8000, scoped, tag = 'input window, operand 1, single buffered']
    #allocation3 [shape = 's32[1]{0}', space=sflag, size = 0x4, scoped, tag = 'scoped memory for tpu_custom_call.1']
    #allocation4 [shape = 's32[1]{0}', space=sflag, size = 0x4, scoped, tag = 'scoped memory for tpu_custom_call.1']
    #allocation5 [shape = 'u8[4096]{0}', space=vmem, size = 0x1000, scoped, tag = 'output window, operand 0, single buffered']
    %7 = vsyncpa [#allocation3], 0
    %8 = vsyncpa [#allocation4], 0
    // Predicated region
    $region2: #{tpu_custom_call.1} parent=1 // pred_check
      _
    $region3: #{tpu_custom_call.1} parent=1 // pred_check_branch
      %10 = sbr.rel (0) target = $region5
    $region4: #{tpu_custom_call.1} parent=1 // pred_region
      _
    $region5: #{tpu_custom_call.1} parent=1 // pred_fallthru
      _
    // Predicated region
    $region6: #{tpu_custom_call.1} parent=1 // pred_check
      _
    $region7: #{tpu_custom_call.1} parent=1 // pred_check_branch
      %12 = sbr.rel (0) target = $region9
    $region8: #{tpu_custom_call.1} parent=1 // pred_region
      %s14 = ssub.s32 1024, 1024
      %15 = vsyncadd [#allocation3], %s14
      %s16 = sshll.u32 [#allocation2], 4
      %s17 = int_to_ptr.vmem [resolvable:$true] %s16
      %22 = dma.hbm_to_vmem [thread:$0]  %s1, 1024, %s17, [#allocation3], 128, 128, 8
    $region9: #{tpu_custom_call.1} parent=1 // pred_fallthru
      _
    // Predicated region
    $region10: #{tpu_custom_call.1} parent=1 // pred_check
      _
    $region11: #{tpu_custom_call.1} parent=1 // pred_check_branch
      %24 = sbr.rel (0) target = $region13
    $region12: #{tpu_custom_call.1} parent=1 // pred_region
      %25 = dma.done [#allocation3], 1024
    $region13: #{tpu_custom_call.1} parent=1 // pred_fallthru
      _
    %v26 = vld [vmem:[%s0] sm:$0xff]
    %v27 = vld [vmem:[#allocation2] sm:$0xff]
    %v28 = vld [vmem:[#allocation2 + $0x8] sm:$0xff]
    %v29 = vld [vmem:[#allocation2 + $0x10] sm:$0xff]
    %v30 = vld [vmem:[#allocation2 + $0x18] sm:$0xff]
    %v31 = vld [vmem:[#allocation2 + $0x20] sm:$0xff]
    %v32 = vld [vmem:[#allocation2 + $0x28] sm:$0xff]
    %v33 = vld [vmem:[#allocation2 + $0x30] sm:$0xff]
    %v34 = vld [vmem:[#allocation2 + $0x38] sm:$0xff]
    %v35 = vlaneseq
    %v36 = vand.u32 %v35, 127
    %37 = vset.pattern.permute.xlu0 0
    %38 = vperm.xlu0 %37, %v26
    %v39 = vpop.permute.xlu0 %38
    %vm40 = vcmp.eq.s32.totalorder %v36, %v39
    %41 = vset.pattern.permute.xlu0 1
    %42 = vperm.xlu0 %41, %v26
    %v43 = vpop.permute.xlu0 %42
    %vm44 = vcmp.eq.s32.totalorder %v36, %v43
    %vm45 = vmor %vm40, %vm44
    %46 = vset.pattern.permute.xlu0 2
    %47 = vperm.xlu0 %46, %v26
    %v48 = vpop.permute.xlu0 %47
    %vm49 = vcmp.eq.s32.totalorder %v36, %v48
    %vm50 = vmor %vm45, %vm49
    %51 = vset.pattern.permute.xlu0 3
    %52 = vperm.xlu0 %51, %v26
    %v53 = vpop.permute.xlu0 %52
    %vm54 = vcmp.eq.s32.totalorder %v36, %v53
    %vm55 = vmor %vm50, %vm54
    %v56 = vsel %vm55, 1, 0
    %v57 = vcvt.s32.f32 %v56
    %vm58 = vcmask 523264
    %v60 = vsel %vm58, %v57, 0
    %62 = vmatprep.subr.mxu0 0.0
    %63 = vmatpush1.msra.mxu0 0.0
    %64 = vmatprep.subr.mxu0 0.0
    %65 = vmatpush1.msra.mxu0 0.0
    %66 = vmatprep.subr.mxu0 0.0
    %67 = vmatpush1.msra.mxu0 0.0
    %68 = vmatprep.subr.mxu0 0.0
    %69 = vmatpush1.msra.mxu0 0.0
    %70 = vmatprep.subr.mxu0 0.0
    %71 = vmatpush1.msra.mxu0 0.0
    %72 = vmatprep.subr.mxu0 0.0
    %73 = vmatpush1.msra.mxu0 0.0
    %74 = vmatprep.subr.mxu0 0.0
    %75 = vmatpush1.msra.mxu0 0.0
    %76 = vmatprep.subr.mxu0 0.0
    %77 = vmatpush1.msra.mxu0 0.0
    %78 = vmatprep.subr.mxu0 0.0
    %79 = vmatpush1.msra.mxu0 %v34
    %80 = vmatprep.subr.mxu0 0.0
    %81 = vmatpush1.msra.mxu0 %v33
    %82 = vmatprep.subr.mxu0 0.0
    %83 = vmatpush1.msra.mxu0 %v32
    %84 = vmatprep.subr.mxu0 0.0
    %85 = vmatpush1.msra.mxu0 %v31
    %86 = vmatprep.subr.mxu0 0.0
    %87 = vmatpush1.msra.mxu0 %v30
    %88 = vmatprep.subr.mxu0 0.0
    %89 = vmatpush1.msra.mxu0 %v29
    %90 = vmatprep.subr.mxu0 0.0
    %91 = vmatpush1.msra.mxu0 %v28
    %92 = vmatprep.subr.mxu0 0.0
    %93 = vmatpush1.msra.mxu0 %v27
    %94 = vmatprep.subr.mxu0 0.0
    %95 = vmatpush2.msra.mxu0 0.0
    %96 = vmatprep.subr.mxu0 0.0
    %97 = vmatpush2.msra.mxu0 0.0
    %98 = vmatprep.subr.mxu0 0.0
    %99 = vmatpush2.msra.mxu0 0.0
    %100 = vmatprep.subr.mxu0 0.0
    %101 = vmatpush2.msra.mxu0 0.0
    %102 = vmatprep.subr.mxu0 0.0
    %103 = vmatpush2.msra.mxu0 0.0
    %104 = vmatprep.subr.mxu0 0.0
    %105 = vmatpush2.msra.mxu0 0.0
    %106 = vmatprep.subr.mxu0 0.0
    %107 = vmatpush2.msra.mxu0 0.0
    %108 = vmatprep.subr.mxu0 0.0
    %109 = vmatpush2.msra.mxu0 0.0
    %110 = vmatprep.subr.mxu0 0.0
    %111 = vmatpush2.msra.mxu0 0.0
    %112 = vmatprep.subr.mxu0 0.0
    %113 = vmatpush2.msra.mxu0 0.0
    %114 = vmatprep.subr.mxu0 0.0
    %115 = vmatpush2.msra.mxu0 0.0
    %116 = vmatprep.subr.mxu0 0.0
    %117 = vmatpush2.msra.mxu0 0.0
    %118 = vmatprep.subr.mxu0 0.0
    %119 = vmatpush2.msra.mxu0 0.0
    %120 = vmatprep.subr.mxu0 0.0
    %121 = vmatpush2.msra.mxu0 0.0
    %122 = vmatprep.subr.mxu0 0.0
    %123 = vmatpush2.msra.mxu0 0.0
    %124 = vmatprep.subr.mxu0 0.0
    %125 = vmatpush2.msra.mxu0 0.0
    %126 = vmatprep.mubr.f32.mxu0 0.0
    %127 = vmatmul.mubr.f32.gmra.mxu0 %v60
    %v128 = vpop.f32.mrf.mxu0
    %v129 = vadd.f32 0.0, %v128
    %v130 = vpop.f32.mrf.mxu0
    %131 = vdwg.mxu0
    %132 = vst [vmem:[#allocation5] sm:$0xff] %v129
    // Predicated region
    $region14: #{tpu_custom_call.1} parent=1 // pred_check
      _
    $region15: #{tpu_custom_call.1} parent=1 // pred_check_branch
      %134 = sbr.rel (0) target = $region17
    $region16: #{tpu_custom_call.1} parent=1 // pred_region
      %s136 = ssub.s32 128, 128
      %137 = vsyncadd [#allocation4], %s136
      %s139 = sshll.u32 [#allocation5], 4
      %s140 = int_to_ptr.vmem [resolvable:$true] %s139
      %142 = dma.vmem_to_hbm [thread:$0]  %s140, 128, %s2, [#allocation4]
    $region17: #{tpu_custom_call.1} parent=1 // pred_fallthru
      _
    // Predicated region
    $region18: #{tpu_custom_call.1} parent=1 // pred_check
      _
    $region19: #{tpu_custom_call.1} parent=1 // pred_check_branch
      %144 = sbr.rel (0) target = $region21
    $region20: #{tpu_custom_call.1} parent=1 // pred_region
      %145 = dma.done [#allocation4], 128
    $region21: #{tpu_custom_call.1} parent=1 // pred_fallthru
      _
    %146 = vsyncpa [#allocation3], 1
    %147 = vsyncpa [#allocation4], 1

// kernel: tpu_custom_call.1
$region0: #{tpu_custom_call.1}
  #allocation0 [shape = 'u32[]', space=smem, size = 0x4, offset = 0x4, fixed_abs, tag = 'smem constant byte address 0x4 - core index']
  #allocation1 [shape = 'u32[144,128]{1,0:T(1,128)}', space=vmem, size = 0x12000, scoped, tag = 'internal scratch']
  %s0 = inlined_call_operand.vmem [shape: s32[8,4], index: 0, kind: input, shape index: {}]
  %s1 = inlined_call_operand.hbm [shape: f32[64,128], index: 1, kind: input, shape index: {}]
  %s2 = inlined_call_operand.hbm [shape: f32[8,128], index: 2, kind: output, shape index: {}]
  %s3 = sld [smem:[#allocation0]]
  $region22: #{tpu_custom_call.1} parent=0
    _
  %s5 = ssub.s32 1, %s3
  %s6 = scalar_select 0, %s5, %s3
  $region1: #{tpu_custom_call.1} parent=0
    #allocation2 [shape = 'u8[32768]{0}', space=vmem, size = 0x8000, scoped, tag = 'input window, operand 1, single buffered']
    #allocation3 [shape = 's32[1]{0}', space=sflag, size = 0x4, scoped, tag = 'scoped memory for tpu_custom_call.1']
    #allocation4 [shape = 's32[1]{0}', space=sflag, size = 0x4, scoped, tag = 'scoped memory for tpu_custom_call.1']
    #allocation5 [shape = 'u8[4096]{0}', space=vmem, size = 0x1000, scoped, tag = 'output window, operand 0, single buffered']
    %7 = vsyncpa [#allocation3], 0
    %8 = vsyncpa [#allocation4], 0
    // Predicated region
    $region2: #{tpu_custom_call.1} parent=1 // pred_check
      _
    $region3: #{tpu_custom_call.1} parent=1 // pred_check_branch
      %10 = sbr.rel (0) target = $region5
    $region4: #{tpu_custom_call.1} parent=1 // pred_region
      _
    $region5: #{tpu_custom_call.1} parent=1 // pred_fallthru
      _
    // Predicated region
    $region6: #{tpu_custom_call.1} parent=1 // pred_check
      _
    $region7: #{tpu_custom_call.1} parent=1 // pred_check_branch
      %12 = sbr.rel (0) target = $region9
    $region8: #{tpu_custom_call.1} parent=1 // pred_region
      %s14 = ssub.s32 1024, 1024
      %15 = vsyncadd [#allocation3], %s14
      %s16 = sshll.u32 [#allocation2], 4
      %s17 = int_to_ptr.vmem [resolvable:$true] %s16
      %22 = dma.hbm_to_vmem [thread:$0]  %s1, 1024, %s17, [#allocation3], 128, 128, 8
    $region9: #{tpu_custom_call.1} parent=1 // pred_fallthru
      _
    // Predicated region
    $region10: #{tpu_custom_call.1} parent=1 // pred_check
      _
    $region11: #{tpu_custom_call.1} parent=1 // pred_check_branch
      %24 = sbr.rel (0) target = $region13
    $region12: #{tpu_custom_call.1} parent=1 // pred_region
      %25 = dma.done [#allocation3], 1024
    $region13: #{tpu_custom_call.1} parent=1 // pred_fallthru
      _
    %v26 = vld [vmem:[%s0] sm:$0xff]
    %v27 = vld [vmem:[#allocation2] sm:$0xff]
    %v28 = vld [vmem:[#allocation2 + $0x8] sm:$0xff]
    %v29 = vld [vmem:[#allocation2 + $0x10] sm:$0xff]
    %v30 = vld [vmem:[#allocation2 + $0x18] sm:$0xff]
    %v31 = vld [vmem:[#allocation2 + $0x20] sm:$0xff]
    %v32 = vld [vmem:[#allocation2 + $0x28] sm:$0xff]
    %v33 = vld [vmem:[#allocation2 + $0x30] sm:$0xff]
    %v34 = vld [vmem:[#allocation2 + $0x38] sm:$0xff]
    %v35 = vlaneseq
    %v36 = vand.u32 %v35, 127
    %37 = vset.pattern.permute.xlu0 0
    %38 = vperm.xlu0 %37, %v26
    %v39 = vpop.permute.xlu0 %38
    %vm40 = vcmp.eq.s32.totalorder %v36, %v39
    %41 = vset.pattern.permute.xlu0 1
    %42 = vperm.xlu0 %41, %v26
    %v43 = vpop.permute.xlu0 %42
    %vm44 = vcmp.eq.s32.totalorder %v36, %v43
    %vm45 = vmor %vm40, %vm44
    %46 = vset.pattern.permute.xlu0 2
    %47 = vperm.xlu0 %46, %v26
    %v48 = vpop.permute.xlu0 %47
    %vm49 = vcmp.eq.s32.totalorder %v36, %v48
    %vm50 = vmor %vm45, %vm49
    %51 = vset.pattern.permute.xlu0 3
    %52 = vperm.xlu0 %51, %v26
    %v53 = vpop.permute.xlu0 %52
    %vm54 = vcmp.eq.s32.totalorder %v36, %v53
    %vm55 = vmor %vm50, %vm54
    %v56 = vsel %vm55, 1, 0
    %v57 = vcvt.s32.f32 %v56
    %vm58 = vcmask 523264
    %v60 = vsel %vm58, %v57, 0
    %62 = vmatprep.subr.mxu0 0.0
    %63 = vmatpush1.msra.mxu0 0.0
    %64 = vmatprep.subr.mxu0 0.0
    %65 = vmatpush1.msra.mxu0 0.0
    %66 = vmatprep.subr.mxu0 0.0
    %67 = vmatpush1.msra.mxu0 0.0
    %68 = vmatprep.subr.mxu0 0.0
    %69 = vmatpush1.msra.mxu0 0.0
    %70 = vmatprep.subr.mxu0 0.0
    %71 = vmatpush1.msra.mxu0 0.0
    %72 = vmatprep.subr.mxu0 0.0
    %73 = vmatpush1.msra.mxu0 0.0
    %74 = vmatprep.subr.mxu0 0.0
    %75 = vmatpush1.msra.mxu0 0.0
    %76 = vmatprep.subr.mxu0 0.0
    %77 = vmatpush1.msra.mxu0 0.0
    %78 = vmatprep.subr.mxu0 0.0
    %79 = vmatpush1.msra.mxu0 %v34
    %80 = vmatprep.subr.mxu0 0.0
    %81 = vmatpush1.msra.mxu0 %v33
    %82 = vmatprep.subr.mxu0 0.0
    %83 = vmatpush1.msra.mxu0 %v32
    %84 = vmatprep.subr.mxu0 0.0
    %85 = vmatpush1.msra.mxu0 %v31
    %86 = vmatprep.subr.mxu0 0.0
    %87 = vmatpush1.msra.mxu0 %v30
    %88 = vmatprep.subr.mxu0 0.0
    %89 = vmatpush1.msra.mxu0 %v29
    %90 = vmatprep.subr.mxu0 0.0
    %91 = vmatpush1.msra.mxu0 %v28
    %92 = vmatprep.subr.mxu0 0.0
    %93 = vmatpush1.msra.mxu0 %v27
    %94 = vmatprep.subr.mxu0 0.0
    %95 = vmatpush2.msra.mxu0 0.0
    %96 = vmatprep.subr.mxu0 0.0
    %97 = vmatpush2.msra.mxu0 0.0
    %98 = vmatprep.subr.mxu0 0.0
    %99 = vmatpush2.msra.mxu0 0.0
    %100 = vmatprep.subr.mxu0 0.0
    %101 = vmatpush2.msra.mxu0 0.0
    %102 = vmatprep.subr.mxu0 0.0
    %103 = vmatpush2.msra.mxu0 0.0
    %104 = vmatprep.subr.mxu0 0.0
    %105 = vmatpush2.msra.mxu0 0.0
    %106 = vmatprep.subr.mxu0 0.0
    %107 = vmatpush2.msra.mxu0 0.0
    %108 = vmatprep.subr.mxu0 0.0
    %109 = vmatpush2.msra.mxu0 0.0
    %110 = vmatprep.subr.mxu0 0.0
    %111 = vmatpush2.msra.mxu0 0.0
    %112 = vmatprep.subr.mxu0 0.0
    %113 = vmatpush2.msra.mxu0 0.0
    %114 = vmatprep.subr.mxu0 0.0
    %115 = vmatpush2.msra.mxu0 0.0
    %116 = vmatprep.subr.mxu0 0.0
    %117 = vmatpush2.msra.mxu0 0.0
    %118 = vmatprep.subr.mxu0 0.0
    %119 = vmatpush2.msra.mxu0 0.0
    %120 = vmatprep.subr.mxu0 0.0
    %121 = vmatpush2.msra.mxu0 0.0
    %122 = vmatprep.subr.mxu0 0.0
    %123 = vmatpush2.msra.mxu0 0.0
    %124 = vmatprep.subr.mxu0 0.0
    %125 = vmatpush2.msra.mxu0 0.0
    %126 = vmatprep.mubr.f32.mxu0 0.0
    %127 = vmatmul.mubr.f32.gmra.mxu0 %v60
    %v128 = vpop.f32.mrf.mxu0
    %v129 = vadd.f32 0.0, %v128
    %v130 = vpop.f32.mrf.mxu0
    %131 = vdwg.mxu0
    %132 = vst [vmem:[#allocation5] sm:$0xff] %v129
    // Predicated region
    $region14: #{tpu_custom_call.1} parent=1 // pred_check
      _
    $region15: #{tpu_custom_call.1} parent=1 // pred_check_branch
      %134 = sbr.rel (0) target = $region17
    $region16: #{tpu_custom_call.1} parent=1 // pred_region
      %s136 = ssub.s32 128, 128
      %137 = vsyncadd [#allocation4], %s136
      %s139 = sshll.u32 [#allocation5], 4
      %s140 = int_to_ptr.vmem [resolvable:$true] %s139
      %142 = dma.vmem_to_hbm [thread:$0]  %s140, 128, %s2, [#allocation4]
    $region17: #{tpu_custom_call.1} parent=1 // pred_fallthru
      _
    // Predicated region
    $region18: #{tpu_custom_call.1} parent=1 // pred_check
      _
    $region19: #{tpu_custom_call.1} parent=1 // pred_check_branch
      %144 = sbr.rel (0) target = $region21
    $region20: #{tpu_custom_call.1} parent=1 // pred_region
      %145 = dma.done [#allocation4], 128
    $region21: #{tpu_custom_call.1} parent=1 // pred_fallthru
      _
    %146 = vsyncpa [#allocation3], 1
    %147 = vsyncpa [#allocation4], 1

</llo_original>
